<compile_context>
chip_gen: v5e
topology: v5e:2x2
jax: 0.10.0
libtpu: 0.0.40
codegen_flags: <defaults>
</compile_context>

<pallas_src>
import jax
import jax.numpy as jnp
from jax.experimental import pallas as pl
from jax.experimental.pallas import tpu as pltpu

_LANES = 512            # lane-dense last dim (multiple of 128)
_MAX_TILE_ROWS = 2048   # (2048, 512) f32 tile = 4 MiB per grid step


def _sum_kernel(x_ref, o_ref):
    """Accumulate sum(x) over the grid into a resident (1, 1) f32 output."""
    @pl.when(pl.program_id(0) == 0)
    def _init():
        o_ref[...] = jnp.zeros_like(o_ref)

    x = x_ref[...].astype(jnp.float32)             # cast in-register, not in HBM
    part = jnp.sum(x, axis=1, keepdims=True)       # lane reduce    -> (tile_rows, 1)
    total = jnp.sum(part, axis=0, keepdims=True)   # sublane reduce -> (1, 1)
    o_ref[...] += total


def _sublane_multiple(dtype):
    bits = jnp.dtype(dtype).itemsize * 8
    return max(8, (32 // bits) * 8)   # 8 (f32), 16 (bf16/f16), 32 (int8/fp8)


def pallas_mean(x):
    """f(x) = mean(x), computed by a Pallas TPU reduction kernel."""
    n = int(x.size)
    flat = x.reshape(-1)                           # keep native dtype in HBM
    sub = _sublane_multiple(flat.dtype)

    rows = -(-n // _LANES)                         # ceil-div to row count
    rows = -(-rows // sub) * sub                   # pad rows to sublane multiple
    tile_rows = min(_MAX_TILE_ROWS, rows)
    rows = -(-rows // tile_rows) * tile_rows       # pad rows to tile multiple

    pad = rows * _LANES - n
    if pad:
        flat = jnp.pad(flat, (0, pad))             # zeros: do not affect the sum
    x2d = flat.reshape(rows, _LANES)

    total = pl.pallas_call(
        _sum_kernel,
        out_shape=jax.ShapeDtypeStruct((1, 1), jnp.float32),
        grid=(rows // tile_rows,),
        in_specs=[pl.BlockSpec((tile_rows, _LANES), lambda i: (i, 0))],
        out_specs=pl.BlockSpec((1, 1), lambda i: (0, 0)),
        compiler_params=pltpu.CompilerParams(
            dimension_semantics=("arbitrary",),    # reduction axis (accumulator)
        ),
    )(x2d)
    return total[0, 0] / jnp.float32(n)


class Printf:
    """JAX/Pallas port of tako.Printf: prints f(x) via print_f, returns x."""

    def __init__(self, f, print_f=print):
        self._f = f
        self._print_f = print_f

    def __call__(self, x):
        # TODO(synk): under jax.jit the host-side print_f would need
        # jax.debug.print / io_callback; eager execution matches PyTorch here.
        self._print_f(self._f(x))
        return x


if __name__ == "__main__":
    key = jax.random.PRNGKey(0)
    x = jax.random.normal(key, (2, 4, 16, 16), dtype=jnp.float32)

    captured = []
    module = Printf(pallas_mean, print_f=captured.append)  # print_f hooks the value

    y = module(x)
    jax.block_until_ready(y)
    val = jax.block_until_ready(captured[0])

    # Reference check (plain JAX)
    ref = jnp.mean(x.astype(jnp.float32))
    assert y is x                                   # forward returns x unchanged
    assert len(captured) == 1                       # print_f called exactly once
    assert jnp.allclose(val, ref, atol=1e-5, rtol=1e-5)

    print("KERNEL_OK")
</pallas_src>

<mosaic_0001>
module attributes {stable_mosaic.version = 11 : i64} {
  func.func @_sum_kernel(%arg0: i32, %arg1: memref<8x512xf32, #tpu.memory_space<vmem>>, %arg2: memref<1x1xf32, #tpu.memory_space<vmem>>) attributes {dimension_semantics = [#tpu.dimension_semantics<arbitrary>], iteration_bounds = array<i64: 1>, scalar_prefetch = 0 : i64, scratch_operands = 0 : i64, tpu.core_type = #tpu.core_type<tc>, window_params = [{transform_indices = @transform_0, window_bounds = array<i64: 8, 512>}, {pipeline_mode = #tpu.pipeline_mode<synchronous>, transform_indices = @transform_1, window_bounds = array<i64: 1, 1>}]} {
    %c0_i32 = arith.constant 0 : i32
    %0 = arith.cmpi eq, %arg0, %c0_i32 : i32
    %1 = arith.extui %0 : i1 to i32
    %c0_i32_0 = arith.constant 0 : i32
    %2 = arith.cmpi ne, %1, %c0_i32_0 : i32
    scf.if %2 {
      %cst_7 = arith.constant 0.000000e+00 : f32
      %11 = vector.broadcast %cst_7 : f32 to vector<1x1xf32>
      %c0_8 = arith.constant 0 : index
      %c0_9 = arith.constant 0 : index
      %12 = vector.load %arg2[%c0_8, %c0_9] : memref<1x1xf32, #tpu.memory_space<vmem>>, vector<1x1xf32>
      tpu.vector_store %arg2[%c0_8, %c0_9], %11 {strides = array<i32>} : memref<1x1xf32, #tpu.memory_space<vmem>>, vector<1x1xf32>,
    } else {
    }
    %c0 = arith.constant 0 : index
    %c0_1 = arith.constant 0 : index
    %3 = vector.load %arg1[%c0, %c0_1] : memref<8x512xf32, #tpu.memory_space<vmem>>, vector<8x512xf32>
    %cst = arith.constant dense<0.000000e+00> : vector<8xf32>
    %4 = vector.multi_reduction <add>, %3, %cst [1] : vector<8x512xf32> to vector<8xf32>
    %5 = vector.shape_cast %4 : vector<8xf32> to vector<8x1xf32>
    %cst_2 = arith.constant dense<0.000000e+00> : vector<1xf32>
    %6 = vector.multi_reduction <add>, %5, %cst_2 [0] : vector<8x1xf32> to vector<1xf32>
    %7 = vector.shape_cast %6 : vector<1xf32> to vector<1x1xf32>
    %c0_3 = arith.constant 0 : index
    %c0_4 = arith.constant 0 : index
    %8 = vector.load %arg2[%c0_3, %c0_4] : memref<1x1xf32, #tpu.memory_space<vmem>>, vector<1x1xf32>
    %9 = arith.addf %8, %7 : vector<1x1xf32>
    %c0_5 = arith.constant 0 : index
    %c0_6 = arith.constant 0 : index
    %10 = vector.load %arg2[%c0_5, %c0_6] : memref<1x1xf32, #tpu.memory_space<vmem>>, vector<1x1xf32>
    tpu.vector_store %arg2[%c0_5, %c0_6], %9 {strides = array<i32>} : memref<1x1xf32, #tpu.memory_space<vmem>>, vector<1x1xf32>,
    return
  }
  func.func @transform_0(%arg0: i32) -> (i32, i32) {
    %c0_i32 = arith.constant 0 : i32
    %c0_i32_0 = arith.constant 0 : i32
    return %arg0, %c0_i32 : i32, i32
  }
  func.func @transform_1(%arg0: i32) -> (i32, i32) {
    %c0_i32 = arith.constant 0 : i32
    %c0_i32_0 = arith.constant 0 : i32
    %c0_i32_1 = arith.constant 0 : i32
    return %c0_i32, %c0_i32_0 : i32, i32
  }
}

</mosaic_0001>

<llo_original>
// kernel: tpu_custom_call.1
$region0: #{tpu_custom_call.1}
  #allocation0 [shape = 'u32[]', space=smem, size = 0x4, offset = 0x4, fixed_abs, tag = 'smem constant byte address 0x4 - core index']
  #allocation1 [shape = 'u32[72,128]{1,0:T(1,128)}', space=vmem, size = 0x9000, scoped, tag = 'internal scratch']
  %s0 = inlined_call_operand.hbm [shape: f32[8,512], index: 0, kind: input, shape index: {}]
  %s1 = inlined_call_operand.hbm [shape: f32[1,1], index: 1, kind: output, shape index: {}]
  %s2 = sld [smem:[#allocation0]]
  $region22: #{tpu_custom_call.1} parent=0
    _
  %s4 = ssub.s32 1, %s2
  %s5 = scalar_select 0, %s4, %s2
  $region1: #{tpu_custom_call.1} parent=0
    #allocation2 [shape = 'u8[16384]{0}', space=vmem, size = 0x4000, scoped, tag = 'input window, operand 0, single buffered']
    #allocation3 [shape = 's32[1]{0}', space=sflag, size = 0x4, scoped, tag = 'scoped memory for tpu_custom_call.1']
    #allocation4 [shape = 's32[1]{0}', space=sflag, size = 0x4, scoped, tag = 'scoped memory for tpu_custom_call.1']
    #allocation5 [shape = 'u8[512]{0}', space=vmem, size = 0x400, scoped, tag = 'output window, operand 0, single buffered']
    %6 = vsyncpa [#allocation3], 0
    %7 = vsyncpa [#allocation4], 0
    // Predicated region
    $region2: #{tpu_custom_call.1} parent=1 // pred_check
      _
    $region3: #{tpu_custom_call.1} parent=1 // pred_check_branch
      %9 = sbr.rel (0) target = $region5
    $region4: #{tpu_custom_call.1} parent=1 // pred_region
      %11 = vsyncadd [#allocation3], 0
      %s13 = sshll.u32 %s0, 4
      %s14 = int_to_ptr.hbm [resolvable:$true] %s13
      %s15 = sshll.u32 [#allocation2], 4
      %s16 = int_to_ptr.vmem [resolvable:$true] %s15
      %18 = dma.hbm_to_vmem [thread:$0]  %s14, 512, %s16, [#allocation3]
    $region5: #{tpu_custom_call.1} parent=1 // pred_fallthru
      _
    // Predicated region
    $region6: #{tpu_custom_call.1} parent=1 // pred_check
      _
    $region7: #{tpu_custom_call.1} parent=1 // pred_check_branch
      %20 = sbr.rel (0) target = $region9
    $region8: #{tpu_custom_call.1} parent=1 // pred_region
      %22 = dma.done [#allocation3], 512
    $region9: #{tpu_custom_call.1} parent=1 // pred_fallthru
      _
    %p23 = scmp.eq.s32.totalorder 0, 0
    // Predicated region
    $region10: #{tpu_custom_call.1} parent=1 // pred_check
      %p24 = pneg %p23
    $region11: #{tpu_custom_call.1} parent=1 // pred_check_branch
      %26 = sbr.rel (%p24) target = $region13
    $region12: #{tpu_custom_call.1} parent=1 // pred_region
      %vm27 = vcmask 0
      %28 = vst.msk [vmem:[#allocation5] sm:$0x1] %vm27, 0.0
    $region13: #{tpu_custom_call.1} parent=1 // pred_fallthru
      _
    %v29 = vld [vmem:[#allocation2] sm:$0xff]
    %v30 = vld [vmem:[#allocation2 + $0x8] sm:$0xff]
    %v31 = vld [vmem:[#allocation2 + $0x10] sm:$0xff]
    %v32 = vld [vmem:[#allocation2 + $0x18] sm:$0xff]
    %v33 = vadd.f32 %v29, %v30
    %v34 = vadd.f32 %v33, %v31
    %v35 = vadd.f32 %v34, %v32
    %36 = vadd.xlane.f32.xlu0 %v35
    %v37 = vpop.xlane.xlu0 %36
    %v38 = vrot.slane %v37, 4
    %v39 = vadd.f32 %v37, %v38
    %v40 = vrot.slane %v39, 2
    %v41 = vadd.f32 %v39, %v40
    %v42 = vrot.slane %v41, 1
    %v43 = vadd.f32 %v41, %v42
    %v44 = vld [vmem:[#allocation5] sm:$0x1]
    %v45 = vadd.f32 %v44, %v43
    %vm46 = vcmask 0
    %47 = vst.msk [vmem:[#allocation5] sm:$0x1] %vm46, %v45
    // Predicated region
    $region14: #{tpu_custom_call.1} parent=1 // pred_check
      _
    $region15: #{tpu_custom_call.1} parent=1 // pred_check_branch
      %49 = sbr.rel (0) target = $region17
    $region16: #{tpu_custom_call.1} parent=1 // pred_region
      %51 = vsyncadd [#allocation4], 0
      %s53 = sshll.u32 [#allocation5], 4
      %s54 = int_to_ptr.vmem [resolvable:$true] %s53
      %s55 = sshll.u32 %s1, 4
      %s56 = int_to_ptr.hbm [resolvable:$true] %s55
      %58 = dma.vmem_to_hbm [thread:$0]  %s54, 16, %s56, [#allocation4]
    $region17: #{tpu_custom_call.1} parent=1 // pred_fallthru
      _
    // Predicated region
    $region18: #{tpu_custom_call.1} parent=1 // pred_check
      _
    $region19: #{tpu_custom_call.1} parent=1 // pred_check_branch
      %60 = sbr.rel (0) target = $region21
    $region20: #{tpu_custom_call.1} parent=1 // pred_region
      %62 = dma.done [#allocation4], 16
    $region21: #{tpu_custom_call.1} parent=1 // pred_fallthru
      _
    %63 = vsyncpa [#allocation3], 1
    %64 = vsyncpa [#allocation4], 1

</llo_original>
